<compile_context>
chip_gen: v5e
topology: v5e:2x2
jax: 0.10.0
libtpu: 0.0.40
codegen_flags: <defaults>
</compile_context>

<pallas_src>
import functools

import numpy as np

import jax
import jax.numpy as jnp
from jax.experimental import pallas as pl
from jax.experimental.pallas import tpu as pltpu


def _round_up(n, m):
    return ((n + m - 1) // m) * m


def _pick_batch_tile(b, max_tile=64):
    """Largest batch tile that keeps the out-spec sublane dim legal (mult-of-8 or full)."""
    if b <= max_tile:
        return b
    for tb in (64, 32, 16, 8):
        if b % tb == 0:
            return tb
    return b  # fall back to a single whole-batch tile


def _fused_cnn_maxpool_kernel(x_ref, w_ref, mask_ref, o_ref, *, k_max, t_pad8):
    # x_ref   : (TB, L_pad, C)        batch tile of the (zero-padded) input
    # w_ref   : (K_max, C, F_pad)     packed im2col weights for ALL layers
    # mask_ref: (T8, F_pad)           1.0 where (t, layer-column) is valid, else 0.0
    # o_ref   : (TB, F_pad)           lane-dense pooled output tile
    tb = x_ref.shape[0]
    c = x_ref.shape[2]
    f_pad = o_ref.shape[1]
    m = tb * t_pad8

    # K_max shifted whole-tile matmuls accumulated in f32 (one MXU push per tap).
    acc = None
    for k in range(k_max):
        xk = x_ref[:, pl.ds(k, t_pad8), :]          # (TB, T8, C): static sublane shift
        xk2 = xk.reshape(m, c)                      # tile-aligned collapse (T8 % 8 == 0)
        part = jnp.dot(xk2, w_ref[k],               # (M, C) @ (C, F_pad) on the MXU
                       preferred_element_type=jnp.float32)
        acc = part if acc is None else acc + part

    r = jnp.maximum(acc, 0.0)                       # ReLU
    r = r.reshape(tb, t_pad8, f_pad)                # aligned split back to (TB, T8, F_pad)
    r = r * mask_ref[...][None, :, :]               # zero invalid (t, layer) entries (exact post-ReLU)
    pooled = jnp.max(r, axis=1)                     # global max-pool over time: one XLU reduce

    # TODO(synk): nn.Dropout(p=0.2) is identity at inference; train-mode dropout omitted.
    # Final ReLU of the module is numerically a no-op on max-of-ReLU values (kept for fidelity).
    o_ref[...] = jnp.maximum(pooled, 0.0).astype(o_ref.dtype)


def prepare_cnn_maxpool(weights_fck, seq_len):
    """One-time transform, hoisted out of the forward path.

    weights_fck: list of PyTorch-layout Conv1d weights, each (F_i, C, K_i), bias-free.
    Returns (packed_w (K_max, C, F_pad), mask (T8, F_pad), meta dict).
    """
    layer_kf = tuple((int(w.shape[2]), int(w.shape[0])) for w in weights_fck)
    c = int(weights_fck[0].shape[1])
    k_max = max(k for k, _ in layer_kf)
    k_min = min(k for k, _ in layer_kf)
    if seq_len < k_max:
        raise ValueError(f"sequence length {seq_len} is shorter than kernel size {k_max}")

    sum_f = sum(f for _, f in layer_kf)
    f_pad = _round_up(sum_f, 128)                   # lane-dense output width
    t_max = seq_len - k_min + 1                     # longest valid-conv length across layers
    t_pad8 = _round_up(t_max, 8)                    # sublane-aligned time extent
    l_pad = t_pad8 + k_max - 1                      # padded input length needed by the taps

    packed = np.zeros((k_max, c, f_pad), np.float32)
    mask = np.zeros((t_pad8, f_pad), np.float32)
    off = 0
    for w, (k, f) in zip(weights_fck, layer_kf):
        w_kcf = np.transpose(np.asarray(w, np.float32), (2, 1, 0))   # (K, C, F)
        packed[:k, :, off:off + f] = w_kcf          # taps k >= K_i stay zero
        mask[:seq_len - k + 1, off:off + f] = 1.0   # valid time positions for this layer
        off += f

    meta = dict(layer_kf=layer_kf, c=c, seq_len=seq_len, sum_f=sum_f, f_pad=f_pad,
                k_max=k_max, t_pad8=t_pad8, l_pad=l_pad)
    return jnp.asarray(packed), jnp.asarray(mask), meta


def cnn_maxpool_forward(x, packed_w, mask, meta, *, batch_tile=None):
    """x: (B, L, C) f32 -> (B, sum F_i) f32, single fused, batch-tiled pallas_call."""
    B, L, C = x.shape
    if L != meta["seq_len"] or C != meta["c"]:
        raise ValueError("input shape does not match prepared weights")
    k_max, t_pad8, l_pad = meta["k_max"], meta["t_pad8"], meta["l_pad"]
    f_pad, sum_f = meta["f_pad"], meta["sum_f"]

    if l_pad > L:                                   # zero-pad time axis for the tap windows
        x = jnp.pad(x, ((0, 0), (0, l_pad - L), (0, 0)))

    tb = batch_tile if batch_tile is not None else _pick_batch_tile(B)
    if B % tb != 0:
        raise ValueError(f"batch tile {tb} must divide batch {B}")

    # VMEM budget: ~2x double-buffered tiles + resident weights/mask + conv intermediates.
    f32 = 4
    est = (2 * tb * l_pad * C * f32
           + 2 * int(packed_w.size) * f32
           + 2 * int(mask.size) * f32
           + 2 * tb * f_pad * f32
           + 3 * tb * t_pad8 * f_pad * f32)
    vmem_limit = int(min(max(2 * est, 16 * 2 ** 20), 60 * 2 ** 20))  # stay under v7x's 64 MiB

    kernel = functools.partial(_fused_cnn_maxpool_kernel, k_max=k_max, t_pad8=t_pad8)
    out = pl.pallas_call(
        kernel,
        out_shape=jax.ShapeDtypeStruct((B, f_pad), jnp.float32),
        grid_spec=pltpu.PrefetchScalarGridSpec(
            num_scalar_prefetch=0,
            grid=(B // tb,),                                       # batch-tiled, pipelined
            in_specs=[
                pl.BlockSpec((tb, l_pad, C), lambda i: (i, 0, 0)),  # x tile (double-buffered)
                pl.BlockSpec(packed_w.shape, lambda i: (0, 0, 0)),  # packed weights, resident
                pl.BlockSpec(mask.shape, lambda i: (0, 0)),         # validity mask, resident
            ],
            out_specs=pl.BlockSpec((tb, f_pad), lambda i: (i, 0)),  # lane-dense output tile
        ),
        compiler_params=pltpu.CompilerParams(
            dimension_semantics=("parallel",),       # shards batch tiles across v7x's 2 TCs
            vmem_limit_bytes=vmem_limit),
    )(x, packed_w, mask)
    return out[:, :sum_f]                            # strip lane padding


def _reference_forward(x, weights_fck):
    """Pure-JAX reference mirroring the PyTorch forward (eval mode, bias=False)."""
    xt = jnp.transpose(x, (0, 2, 1))                 # (B, C, L) == x.transpose(-1, -2)
    outs = []
    for w in weights_fck:                            # (F, C, K)
        r = jax.lax.conv_general_dilated(
            xt, w, window_strides=(1,), padding="VALID",
            dimension_numbers=("NCH", "OIH", "NCH"),
            precision=jax.lax.Precision.HIGHEST)
        r = jnp.maximum(r, 0.0)
        outs.append(jnp.max(r, axis=-1))             # max-pool over full time + squeeze
    p = jnp.concatenate(outs, axis=1)
    return jnp.maximum(p, 0.0)


if __name__ == "__main__":
    # Small shapes consistent with the module:
    #   in_channels C=4, kernel_filters=[4, 8] (Conv1d: out_channels == kernel_size),
    #   batch B=2, sequence length L=16 -> output (2, 4+8) = (2, 12).
    B, L, C = 2, 16, 4
    kernel_filters = [4, 8]

    key = jax.random.PRNGKey(0)
    kx, *kws = jax.random.split(key, 1 + len(kernel_filters))

    x = jax.random.normal(kx, (B, L, C), dtype=jnp.float32)

    weights = []
    for kf, kw in zip(kernel_filters, kws):
        # deterministic kaiming-uniform-style init: U(-b, b), b = 1/sqrt(C*K)
        bound = 1.0 / (C * kf) ** 0.5
        w = jax.random.uniform(kw, (kf, C, kf), jnp.float32,
                               minval=-bound, maxval=bound)        # (F, C, K)
        weights.append(w)

    packed_w, mask, meta = prepare_cnn_maxpool(weights, seq_len=L)  # one-time, outside forward
    out = cnn_maxpool_forward(x, packed_w, mask, meta)
    out = jax.block_until_ready(out)

    ref = _reference_forward(x, weights)
    assert out.shape == (B, sum(kernel_filters)), out.shape
    assert jnp.allclose(out, ref, atol=1e-5, rtol=1e-5), (
        f"max abs err {jnp.max(jnp.abs(out - ref))}")

    print("KERNEL_OK")
</pallas_src>

<mosaic_0001>
module attributes {stable_mosaic.version = 11 : i64} {
  func.func @_fused_cnn_maxpool_kernel(%arg0: i32, %arg1: memref<2x23x4xf32, #tpu.memory_space<vmem>>, %arg2: memref<8x4x128xf32, #tpu.memory_space<vmem>>, %arg3: memref<16x128xf32, #tpu.memory_space<vmem>>, %arg4: memref<2x128xf32, #tpu.memory_space<vmem>>) attributes {dimension_semantics = [#tpu.dimension_semantics<parallel>], iteration_bounds = array<i64: 1>, scalar_prefetch = 0 : i64, scratch_operands = 0 : i64, tpu.core_type = #tpu.core_type<tc>, window_params = [{transform_indices = @transform_0, window_bounds = array<i64: 2, 23, 4>}, {pipeline_mode = #tpu.pipeline_mode<synchronous>, transform_indices = @transform_1, window_bounds = array<i64: 8, 4, 128>}, {pipeline_mode = #tpu.pipeline_mode<synchronous>, transform_indices = @transform_2, window_bounds = array<i64: 16, 128>}, {transform_indices = @transform_3, window_bounds = array<i64: 2, 128>}]} {
    %c0 = arith.constant 0 : index
    %c0_0 = arith.constant 0 : index
    %c0_1 = arith.constant 0 : index
    %0 = vector.load %arg1[%c0, %c0_0, %c0_1] : memref<2x23x4xf32, #tpu.memory_space<vmem>>, vector<2x16x4xf32>
    %1 = vector.shape_cast %0 : vector<2x16x4xf32> to vector<32x4xf32>
    %c0_2 = arith.constant 0 : index
    %c0_3 = arith.constant 0 : index
    %c0_4 = arith.constant 0 : index
    %2 = vector.load %arg2[%c0_2, %c0_3, %c0_4] : memref<8x4x128xf32, #tpu.memory_space<vmem>>, vector<1x4x128xf32>
    %3 = vector.shape_cast %2 : vector<1x4x128xf32> to vector<4x128xf32>
    %cst = arith.constant dense<0.000000e+00> : vector<32x128xf32>
    %4 = tpu.matmul %1, %3, %cst {dimension_numbers = #tpu.dot_dimension_numbers<[1], [0], [0], [1], [0, 0, 1, 1], [], []>} : vector<32x4xf32>, vector<4x128xf32>, vector<32x128xf32> -> vector<32x128xf32>
    %c0_5 = arith.constant 0 : index
    %c1 = arith.constant 1 : index
    %c0_6 = arith.constant 0 : index
    %5 = vector.load %arg1[%c0_5, %c1, %c0_6] : memref<2x23x4xf32, #tpu.memory_space<vmem>>, vector<2x16x4xf32>
    %6 = vector.shape_cast %5 : vector<2x16x4xf32> to vector<32x4xf32>
    %c1_7 = arith.constant 1 : index
    %c0_8 = arith.constant 0 : index
    %c0_9 = arith.constant 0 : index
    %7 = vector.load %arg2[%c1_7, %c0_8, %c0_9] : memref<8x4x128xf32, #tpu.memory_space<vmem>>, vector<1x4x128xf32>
    %8 = vector.shape_cast %7 : vector<1x4x128xf32> to vector<4x128xf32>
    %cst_10 = arith.constant dense<0.000000e+00> : vector<32x128xf32>
    %9 = tpu.matmul %6, %8, %cst_10 {dimension_numbers = #tpu.dot_dimension_numbers<[1], [0], [0], [1], [0, 0, 1, 1], [], []>} : vector<32x4xf32>, vector<4x128xf32>, vector<32x128xf32> -> vector<32x128xf32>
    %10 = arith.addf %4, %9 : vector<32x128xf32>
    %c0_11 = arith.constant 0 : index
    %c2 = arith.constant 2 : index
    %c0_12 = arith.constant 0 : index
    %11 = vector.load %arg1[%c0_11, %c2, %c0_12] : memref<2x23x4xf32, #tpu.memory_space<vmem>>, vector<2x16x4xf32>
    %12 = vector.shape_cast %11 : vector<2x16x4xf32> to vector<32x4xf32>
    %c2_13 = arith.constant 2 : index
    %c0_14 = arith.constant 0 : index
    %c0_15 = arith.constant 0 : index
    %13 = vector.load %arg2[%c2_13, %c0_14, %c0_15] : memref<8x4x128xf32, #tpu.memory_space<vmem>>, vector<1x4x128xf32>
    %14 = vector.shape_cast %13 : vector<1x4x128xf32> to vector<4x128xf32>
    %cst_16 = arith.constant dense<0.000000e+00> : vector<32x128xf32>
    %15 = tpu.matmul %12, %14, %cst_16 {dimension_numbers = #tpu.dot_dimension_numbers<[1], [0], [0], [1], [0, 0, 1, 1], [], []>} : vector<32x4xf32>, vector<4x128xf32>, vector<32x128xf32> -> vector<32x128xf32>
    %16 = arith.addf %10, %15 : vector<32x128xf32>
    %c0_17 = arith.constant 0 : index
    %c3 = arith.constant 3 : index
    %c0_18 = arith.constant 0 : index
    %17 = vector.load %arg1[%c0_17, %c3, %c0_18] : memref<2x23x4xf32, #tpu.memory_space<vmem>>, vector<2x16x4xf32>
    %18 = vector.shape_cast %17 : vector<2x16x4xf32> to vector<32x4xf32>
    %c3_19 = arith.constant 3 : index
    %c0_20 = arith.constant 0 : index
    %c0_21 = arith.constant 0 : index
    %19 = vector.load %arg2[%c3_19, %c0_20, %c0_21] : memref<8x4x128xf32, #tpu.memory_space<vmem>>, vector<1x4x128xf32>
    %20 = vector.shape_cast %19 : vector<1x4x128xf32> to vector<4x128xf32>
    %cst_22 = arith.constant dense<0.000000e+00> : vector<32x128xf32>
    %21 = tpu.matmul %18, %20, %cst_22 {dimension_numbers = #tpu.dot_dimension_numbers<[1], [0], [0], [1], [0, 0, 1, 1], [], []>} : vector<32x4xf32>, vector<4x128xf32>, vector<32x128xf32> -> vector<32x128xf32>
    %22 = arith.addf %16, %21 : vector<32x128xf32>
    %c0_23 = arith.constant 0 : index
    %c4 = arith.constant 4 : index
    %c0_24 = arith.constant 0 : index
    %23 = vector.load %arg1[%c0_23, %c4, %c0_24] : memref<2x23x4xf32, #tpu.memory_space<vmem>>, vector<2x16x4xf32>
    %24 = vector.shape_cast %23 : vector<2x16x4xf32> to vector<32x4xf32>
    %c4_25 = arith.constant 4 : index
    %c0_26 = arith.constant 0 : index
    %c0_27 = arith.constant 0 : index
    %25 = vector.load %arg2[%c4_25, %c0_26, %c0_27] : memref<8x4x128xf32, #tpu.memory_space<vmem>>, vector<1x4x128xf32>
    %26 = vector.shape_cast %25 : vector<1x4x128xf32> to vector<4x128xf32>
    %cst_28 = arith.constant dense<0.000000e+00> : vector<32x128xf32>
    %27 = tpu.matmul %24, %26, %cst_28 {dimension_numbers = #tpu.dot_dimension_numbers<[1], [0], [0], [1], [0, 0, 1, 1], [], []>} : vector<32x4xf32>, vector<4x128xf32>, vector<32x128xf32> -> vector<32x128xf32>
    %28 = arith.addf %22, %27 : vector<32x128xf32>
    %c0_29 = arith.constant 0 : index
    %c5 = arith.constant 5 : index
    %c0_30 = arith.constant 0 : index
    %29 = vector.load %arg1[%c0_29, %c5, %c0_30] : memref<2x23x4xf32, #tpu.memory_space<vmem>>, vector<2x16x4xf32>
    %30 = vector.shape_cast %29 : vector<2x16x4xf32> to vector<32x4xf32>
    %c5_31 = arith.constant 5 : index
    %c0_32 = arith.constant 0 : index
    %c0_33 = arith.constant 0 : index
    %31 = vector.load %arg2[%c5_31, %c0_32, %c0_33] : memref<8x4x128xf32, #tpu.memory_space<vmem>>, vector<1x4x128xf32>
    %32 = vector.shape_cast %31 : vector<1x4x128xf32> to vector<4x128xf32>
    %cst_34 = arith.constant dense<0.000000e+00> : vector<32x128xf32>
    %33 = tpu.matmul %30, %32, %cst_34 {dimension_numbers = #tpu.dot_dimension_numbers<[1], [0], [0], [1], [0, 0, 1, 1], [], []>} : vector<32x4xf32>, vector<4x128xf32>, vector<32x128xf32> -> vector<32x128xf32>
    %34 = arith.addf %28, %33 : vector<32x128xf32>
    %c0_35 = arith.constant 0 : index
    %c6 = arith.constant 6 : index
    %c0_36 = arith.constant 0 : index
    %35 = vector.load %arg1[%c0_35, %c6, %c0_36] : memref<2x23x4xf32, #tpu.memory_space<vmem>>, vector<2x16x4xf32>
    %36 = vector.shape_cast %35 : vector<2x16x4xf32> to vector<32x4xf32>
    %c6_37 = arith.constant 6 : index
    %c0_38 = arith.constant 0 : index
    %c0_39 = arith.constant 0 : index
    %37 = vector.load %arg2[%c6_37, %c0_38, %c0_39] : memref<8x4x128xf32, #tpu.memory_space<vmem>>, vector<1x4x128xf32>
    %38 = vector.shape_cast %37 : vector<1x4x128xf32> to vector<4x128xf32>
    %cst_40 = arith.constant dense<0.000000e+00> : vector<32x128xf32>
    %39 = tpu.matmul %36, %38, %cst_40 {dimension_numbers = #tpu.dot_dimension_numbers<[1], [0], [0], [1], [0, 0, 1, 1], [], []>} : vector<32x4xf32>, vector<4x128xf32>, vector<32x128xf32> -> vector<32x128xf32>
    %40 = arith.addf %34, %39 : vector<32x128xf32>
    %c0_41 = arith.constant 0 : index
    %c7 = arith.constant 7 : index
    %c0_42 = arith.constant 0 : index
    %41 = vector.load %arg1[%c0_41, %c7, %c0_42] : memref<2x23x4xf32, #tpu.memory_space<vmem>>, vector<2x16x4xf32>
    %42 = vector.shape_cast %41 : vector<2x16x4xf32> to vector<32x4xf32>
    %c7_43 = arith.constant 7 : index
    %c0_44 = arith.constant 0 : index
    %c0_45 = arith.constant 0 : index
    %43 = vector.load %arg2[%c7_43, %c0_44, %c0_45] : memref<8x4x128xf32, #tpu.memory_space<vmem>>, vector<1x4x128xf32>
    %44 = vector.shape_cast %43 : vector<1x4x128xf32> to vector<4x128xf32>
    %cst_46 = arith.constant dense<0.000000e+00> : vector<32x128xf32>
    %45 = tpu.matmul %42, %44, %cst_46 {dimension_numbers = #tpu.dot_dimension_numbers<[1], [0], [0], [1], [0, 0, 1, 1], [], []>} : vector<32x4xf32>, vector<4x128xf32>, vector<32x128xf32> -> vector<32x128xf32>
    %46 = arith.addf %40, %45 : vector<32x128xf32>
    %cst_47 = arith.constant 0.000000e+00 : f32
    %47 = vector.broadcast %cst_47 : f32 to vector<32x128xf32>
    %48 = arith.maximumf %46, %47 : vector<32x128xf32>
    %49 = vector.shape_cast %48 : vector<32x128xf32> to vector<2x16x128xf32>
    %c0_48 = arith.constant 0 : index
    %c0_49 = arith.constant 0 : index
    %50 = vector.load %arg3[%c0_48, %c0_49] : memref<16x128xf32, #tpu.memory_space<vmem>>, vector<16x128xf32>
    %51 = vector.shape_cast %50 : vector<16x128xf32> to vector<1x16x128xf32>
    %52 = vector.broadcast %51 : vector<1x16x128xf32> to vector<2x16x128xf32>
    %53 = arith.mulf %49, %52 : vector<2x16x128xf32>
    %cst_50 = arith.constant dense<0xFF800000> : vector<2x128xf32>
    %54 = vector.multi_reduction <maximumf>, %53, %cst_50 [1] : vector<2x16x128xf32> to vector<2x128xf32>
    %cst_51 = arith.constant 0.000000e+00 : f32
    %55 = vector.broadcast %cst_51 : f32 to vector<2x128xf32>
    %56 = arith.maximumf %54, %55 : vector<2x128xf32>
    %c0_52 = arith.constant 0 : index
    %c0_53 = arith.constant 0 : index
    %57 = vector.load %arg4[%c0_52, %c0_53] : memref<2x128xf32, #tpu.memory_space<vmem>>, vector<2x128xf32>
    tpu.vector_store %arg4[%c0_52, %c0_53], %56 {strides = array<i32>} : memref<2x128xf32, #tpu.memory_space<vmem>>, vector<2x128xf32>,
    return
  }
  func.func @transform_0(%arg0: i32) -> (i32, i32, i32) {
    %c0_i32 = arith.constant 0 : i32
    %c0_i32_0 = arith.constant 0 : i32
    %c0_i32_1 = arith.constant 0 : i32
    return %arg0, %c0_i32, %c0_i32_0 : i32, i32, i32
  }
  func.func @transform_1(%arg0: i32) -> (i32, i32, i32) {
    %c0_i32 = arith.constant 0 : i32
    %c0_i32_0 = arith.constant 0 : i32
    %c0_i32_1 = arith.constant 0 : i32
    %c0_i32_2 = arith.constant 0 : i32
    return %c0_i32, %c0_i32_0, %c0_i32_1 : i32, i32, i32
  }
  func.func @transform_2(%arg0: i32) -> (i32, i32) {
    %c0_i32 = arith.constant 0 : i32
    %c0_i32_0 = arith.constant 0 : i32
    %c0_i32_1 = arith.constant 0 : i32
    return %c0_i32, %c0_i32_0 : i32, i32
  }
  func.func @transform_3(%arg0: i32) -> (i32, i32) {
    %c0_i32 = arith.constant 0 : i32
    %c0_i32_0 = arith.constant 0 : i32
    return %arg0, %c0_i32 : i32, i32
  }
}

</mosaic_0001>

<llo_original>
// kernel: tpu_custom_call.1
$region0: #{tpu_custom_call.1}
  #allocation0 [shape = 'u32[]', space=smem, size = 0x4, offset = 0x4, fixed_abs, tag = 'smem constant byte address 0x4 - core index']
  #allocation1 [shape = 'u32[72,128]{1,0:T(1,128)}', space=vmem, size = 0x9000, scoped, tag = 'internal scratch']
  %s0 = inlined_call_operand.vmem [shape: f32[2,23,4], index: 0, kind: input, shape index: {}]
  %s1 = inlined_call_operand.vmem [shape: f32[8,4,128], index: 1, kind: input, shape index: {}]
  %s2 = inlined_call_operand.vmem [shape: f32[16,128], index: 2, kind: input, shape index: {}]
  %s3 = inlined_call_operand.hbm [shape: f32[2,128], index: 3, kind: output, shape index: {}]
  %s4 = sld [smem:[#allocation0]]
  $region22: #{tpu_custom_call.1} parent=0
    _
  %s6 = ssub.s32 1, %s4
  %s7 = scalar_select 0, %s6, %s4
  $region1: #{tpu_custom_call.1} parent=0
    #allocation2 [shape = 'u8[1024]{0}', space=vmem, size = 0x400, scoped, tag = 'output window, operand 0, single buffered']
    #allocation3 [shape = 's32[1]{0}', space=sflag, size = 0x4, scoped, tag = 'scoped memory for tpu_custom_call.1']
    %8 = vsyncpa [#allocation3], 0
    // Predicated region
    $region2: #{tpu_custom_call.1} parent=1 // pred_check
      _
    $region3: #{tpu_custom_call.1} parent=1 // pred_check_branch
      %10 = sbr.rel (0) target = $region5
    $region4: #{tpu_custom_call.1} parent=1 // pred_region
      _
    $region5: #{tpu_custom_call.1} parent=1 // pred_fallthru
      _
    // Predicated region
    $region6: #{tpu_custom_call.1} parent=1 // pred_check
      _
    $region7: #{tpu_custom_call.1} parent=1 // pred_check_branch
      %12 = sbr.rel (0) target = $region9
    $region8: #{tpu_custom_call.1} parent=1 // pred_region
      _
    $region9: #{tpu_custom_call.1} parent=1 // pred_fallthru
      _
    // Predicated region
    $region10: #{tpu_custom_call.1} parent=1 // pred_check
      _
    $region11: #{tpu_custom_call.1} parent=1 // pred_check_branch
      %14 = sbr.rel (0) target = $region13
    $region12: #{tpu_custom_call.1} parent=1 // pred_region
      _
    $region13: #{tpu_custom_call.1} parent=1 // pred_fallthru
      _
    %v15 = vld [vmem:[%s0] sm:$0xff]
    %v16 = vld [vmem:[%s0 + $0x8] sm:$0xff]
    %v17 = vld [vmem:[%s0 + $0x18] sm:$0xff]
    %v18 = vld [vmem:[%s0 + $0x20] sm:$0xff]
    %v19 = vld [vmem:[%s1] sm:$0xf]
    %v20 = vld [vmem:[%s0 + $0x1] sm:$0xff]
    %v21 = vld [vmem:[%s0 + $0x9] sm:$0xff]
    %v22 = vld [vmem:[%s0 + $0x19] sm:$0xff]
    %v23 = vld [vmem:[%s0 + $0x21] sm:$0xff]
    %s24 = scalar_lea.vmem %s1, 4
    %v25 = vld [vmem:[%s24] sm:$0xf]
    %vm26 = vcmask 31744
    %v28 = vsel %vm26, %v20, 0
    %v31 = vsel %vm26, %v21, 0
    %v34 = vsel %vm26, %v22, 0
    %v37 = vsel %vm26, %v23, 0
    %vm39 = vcmask 1043456
    %v41 = vsel %vm39, %v25, 0
    %43 = vmatpush.msra.mxu0 0.0
    %44 = vmatpush.msra.mxu0 0.0
    %45 = vmatpush.msra.mxu0 0.0
    %46 = vmatpush.msra.mxu0 0.0
    %47 = vmatpush.msra.mxu0 0.0
    %48 = vmatpush.msra.mxu0 0.0
    %49 = vmatpush.msra.mxu0 0.0
    %50 = vmatpush.msra.mxu0 0.0
    %51 = vmatpush.msra.mxu0 0.0
    %52 = vmatpush.msra.mxu0 0.0
    %53 = vmatpush.msra.mxu0 0.0
    %54 = vmatpush.msra.mxu0 0.0
    %55 = vmatpush.msra.mxu0 0.0
    %56 = vmatpush.msra.mxu0 0.0
    %57 = vmatpush.msra.mxu0 0.0
    %58 = vmatpush.msra.mxu0 %v41
    %59 = vmatmul.f32.gmra.mxu0 %v28
    %v60 = vpop.f32.mrf.mxu0
    %v61 = vadd.f32 0.0, %v60
    %62 = vmatmul.f32.gmra.mxu0 %v31
    %v63 = vpop.f32.mrf.mxu0
    %v64 = vadd.f32 0.0, %v63
    %65 = vmatmul.f32.gmra.mxu0 %v34
    %v66 = vpop.f32.mrf.mxu0
    %v67 = vadd.f32 0.0, %v66
    %68 = vmatmul.f32.gmra.mxu0 %v37
    %v69 = vpop.f32.mrf.mxu0
    %v70 = vadd.f32 0.0, %v69
    %71 = vdwg.mxu0
    %v73 = vsel %vm26, %v15, 0
    %v76 = vsel %vm26, %v16, 0
    %v79 = vsel %vm26, %v17, 0
    %v82 = vsel %vm26, %v18, 0
    %v85 = vsel %vm39, %v19, 0
    %87 = vmatpush.msra.mxu0 0.0
    %88 = vmatpush.msra.mxu0 0.0
    %89 = vmatpush.msra.mxu0 0.0
    %90 = vmatpush.msra.mxu0 0.0
    %91 = vmatpush.msra.mxu0 0.0
    %92 = vmatpush.msra.mxu0 0.0
    %93 = vmatpush.msra.mxu0 0.0
    %94 = vmatpush.msra.mxu0 0.0
    %95 = vmatpush.msra.mxu0 0.0
    %96 = vmatpush.msra.mxu0 0.0
    %97 = vmatpush.msra.mxu0 0.0
    %98 = vmatpush.msra.mxu0 0.0
    %99 = vmatpush.msra.mxu0 0.0
    %100 = vmatpush.msra.mxu0 0.0
    %101 = vmatpush.msra.mxu0 0.0
    %102 = vmatpush.msra.mxu0 %v85
    %103 = vmatmul.f32.gmra.mxu0 %v73
    %v104 = vpop.f32.mrf.mxu0
    %v105 = vadd.f32 %v61, %v104
    %106 = vmatmul.f32.gmra.mxu0 %v76
    %v107 = vpop.f32.mrf.mxu0
    %v108 = vadd.f32 %v64, %v107
    %109 = vmatmul.f32.gmra.mxu0 %v79
    %v110 = vpop.f32.mrf.mxu0
    %v111 = vadd.f32 %v67, %v110
    %112 = vmatmul.f32.gmra.mxu0 %v82
    %v113 = vpop.f32.mrf.mxu0
    %v114 = vadd.f32 %v70, %v113
    %115 = vdwg.mxu0
    %v116 = vld [vmem:[%s0 + $0x2] sm:$0xff]
    %v117 = vld [vmem:[%s0 + $0xa] sm:$0xff]
    %v118 = vld [vmem:[%s0 + $0x1a] sm:$0xff]
    %v119 = vld [vmem:[%s0 + $0x22] sm:$0xff]
    %s120 = scalar_lea.vmem %s1, 8
    %v121 = vld [vmem:[%s120] sm:$0xf]
    %v123 = vsel %vm26, %v116, 0
    %v126 = vsel %vm26, %v117, 0
    %v129 = vsel %vm26, %v118, 0
    %v132 = vsel %vm26, %v119, 0
    %v135 = vsel %vm39, %v121, 0
    %137 = vmatpush.msra.mxu0 0.0
    %138 = vmatpush.msra.mxu0 0.0
    %139 = vmatpush.msra.mxu0 0.0
    %140 = vmatpush.msra.mxu0 0.0
    %141 = vmatpush.msra.mxu0 0.0
    %142 = vmatpush.msra.mxu0 0.0
    %143 = vmatpush.msra.mxu0 0.0
    %144 = vmatpush.msra.mxu0 0.0
    %145 = vmatpush.msra.mxu0 0.0
    %146 = vmatpush.msra.mxu0 0.0
    %147 = vmatpush.msra.mxu0 0.0
    %148 = vmatpush.msra.mxu0 0.0
    %149 = vmatpush.msra.mxu0 0.0
    %150 = vmatpush.msra.mxu0 0.0
    %151 = vmatpush.msra.mxu0 0.0
    %152 = vmatpush.msra.mxu0 %v135
    %153 = vmatmul.f32.gmra.mxu0 %v123
    %v154 = vpop.f32.mrf.mxu0
    %v155 = vadd.f32 0.0, %v154
    %156 = vmatmul.f32.gmra.mxu0 %v126
    %v157 = vpop.f32.mrf.mxu0
    %v158 = vadd.f32 0.0, %v157
    %159 = vmatmul.f32.gmra.mxu0 %v129
    %v160 = vpop.f32.mrf.mxu0
    %v161 = vadd.f32 0.0, %v160
    %162 = vmatmul.f32.gmra.mxu0 %v132
    %v163 = vpop.f32.mrf.mxu0
    %v164 = vadd.f32 0.0, %v163
    %165 = vdwg.mxu0
    %v166 = vadd.f32 %v105, %v155
    %v167 = vadd.f32 %v108, %v158
    %v168 = vadd.f32 %v111, %v161
    %v169 = vadd.f32 %v114, %v164
    %v170 = vld [vmem:[%s0 + $0x3] sm:$0xff]
    %v171 = vld [vmem:[%s0 + $0xb] sm:$0xff]
    %v172 = vld [vmem:[%s0 + $0x1b] sm:$0xff]
    %v173 = vld [vmem:[%s0 + $0x23] sm:$0xff]
    %s174 = scalar_lea.vmem %s1, 12
    %v175 = vld [vmem:[%s174] sm:$0xf]
    %v177 = vsel %vm26, %v170, 0
    %v180 = vsel %vm26, %v171, 0
    %v183 = vsel %vm26, %v172, 0
    %v186 = vsel %vm26, %v173, 0
    %v189 = vsel %vm39, %v175, 0
    %191 = vmatpush.msra.mxu0 0.0
    %192 = vmatpush.msra.mxu0 0.0
    %193 = vmatpush.msra.mxu0 0.0
    %194 = vmatpush.msra.mxu0 0.0
    %195 = vmatpush.msra.mxu0 0.0
    %196 = vmatpush.msra.mxu0 0.0
    %197 = vmatpush.msra.mxu0 0.0
    %198 = vmatpush.msra.mxu0 0.0
    %199 = vmatpush.msra.mxu0 0.0
    %200 = vmatpush.msra.mxu0 0.0
    %201 = vmatpush.msra.mxu0 0.0
    %202 = vmatpush.msra.mxu0 0.0
    %203 = vmatpush.msra.mxu0 0.0
    %204 = vmatpush.msra.mxu0 0.0
    %205 = vmatpush.msra.mxu0 0.0
    %206 = vmatpush.msra.mxu0 %v189
    %207 = vmatmul.f32.gmra.mxu0 %v177
    %v208 = vpop.f32.mrf.mxu0
    %v209 = vadd.f32 0.0, %v208
    %210 = vmatmul.f32.gmra.mxu0 %v180
    %v211 = vpop.f32.mrf.mxu0
    %v212 = vadd.f32 0.0, %v211
    %213 = vmatmul.f32.gmra.mxu0 %v183
    %v214 = vpop.f32.mrf.mxu0
    %v215 = vadd.f32 0.0, %v214
    %216 = vmatmul.f32.gmra.mxu0 %v186
    %v217 = vpop.f32.mrf.mxu0
    %v218 = vadd.f32 0.0, %v217
    %219 = vdwg.mxu0
    %v220 = vadd.f32 %v166, %v209
    %v221 = vadd.f32 %v167, %v212
    %v222 = vadd.f32 %v168, %v215
    %v223 = vadd.f32 %v169, %v218
    %v224 = vld [vmem:[%s0 + $0x4] sm:$0xff]
    %v225 = vld [vmem:[%s0 + $0xc] sm:$0xff]
    %v226 = vld [vmem:[%s0 + $0x1c] sm:$0xff]
    %v227 = vld [vmem:[%s0 + $0x24] sm:$0xff]
    %s228 = scalar_lea.vmem %s1, 16
    %v229 = vld [vmem:[%s228] sm:$0xf]
    %v231 = vsel %vm26, %v224, 0
    %v234 = vsel %vm26, %v225, 0
    %v237 = vsel %vm26, %v226, 0
    %v240 = vsel %vm26, %v227, 0
    %v243 = vsel %vm39, %v229, 0
    %245 = vmatpush.msra.mxu0 0.0
    %246 = vmatpush.msra.mxu0 0.0
    %247 = vmatpush.msra.mxu0 0.0
    %248 = vmatpush.msra.mxu0 0.0
    %249 = vmatpush.msra.mxu0 0.0
    %250 = vmatpush.msra.mxu0 0.0
    %251 = vmatpush.msra.mxu0 0.0
    %252 = vmatpush.msra.mxu0 0.0
    %253 = vmatpush.msra.mxu0 0.0
    %254 = vmatpush.msra.mxu0 0.0
    %255 = vmatpush.msra.mxu0 0.0
    %256 = vmatpush.msra.mxu0 0.0
    %257 = vmatpush.msra.mxu0 0.0
    %258 = vmatpush.msra.mxu0 0.0
    %259 = vmatpush.msra.mxu0 0.0
    %260 = vmatpush.msra.mxu0 %v243
    %261 = vmatmul.f32.gmra.mxu0 %v231
    %v262 = vpop.f32.mrf.mxu0
    %v263 = vadd.f32 0.0, %v262
    %264 = vmatmul.f32.gmra.mxu0 %v234
    %v265 = vpop.f32.mrf.mxu0
    %v266 = vadd.f32 0.0, %v265
    %267 = vmatmul.f32.gmra.mxu0 %v237
    %v268 = vpop.f32.mrf.mxu0
    %v269 = vadd.f32 0.0, %v268
    %270 = vmatmul.f32.gmra.mxu0 %v240
    %v271 = vpop.f32.mrf.mxu0
    %v272 = vadd.f32 0.0, %v271
    %273 = vdwg.mxu0
    %v274 = vadd.f32 %v220, %v263
    %v275 = vadd.f32 %v221, %v266
    %v276 = vadd.f32 %v222, %v269
    %v277 = vadd.f32 %v223, %v272
    %v278 = vld [vmem:[%s0 + $0x5] sm:$0xff]
    %v279 = vld [vmem:[%s0 + $0xd] sm:$0xff]
    %v280 = vld [vmem:[%s0 + $0x1d] sm:$0xff]
    %v281 = vld [vmem:[%s0 + $0x25] sm:$0xff]
    %s282 = scalar_lea.vmem %s1, 20
    %v283 = vld [vmem:[%s282] sm:$0xf]
    %v285 = vsel %vm26, %v278, 0
    %v288 = vsel %vm26, %v279, 0
    %v291 = vsel %vm26, %v280, 0
    %v294 = vsel %vm26, %v281, 0
    %v297 = vsel %vm39, %v283, 0
    %299 = vmatpush.msra.mxu0 0.0
    %300 = vmatpush.msra.mxu0 0.0
    %301 = vmatpush.msra.mxu0 0.0
    %302 = vmatpush.msra.mxu0 0.0
    %303 = vmatpush.msra.mxu0 0.0
    %304 = vmatpush.msra.mxu0 0.0
    %305 = vmatpush.msra.mxu0 0.0
    %306 = vmatpush.msra.mxu0 0.0
    %307 = vmatpush.msra.mxu0 0.0
    %308 = vmatpush.msra.mxu0 0.0
    %309 = vmatpush.msra.mxu0 0.0
    %310 = vmatpush.msra.mxu0 0.0
    %311 = vmatpush.msra.mxu0 0.0
    %312 = vmatpush.msra.mxu0 0.0
    %313 = vmatpush.msra.mxu0 0.0
    %314 = vmatpush.msra.mxu0 %v297
    %315 = vmatmul.f32.gmra.mxu0 %v285
    %v316 = vpop.f32.mrf.mxu0
    %v317 = vadd.f32 0.0, %v316
    %318 = vmatmul.f32.gmra.mxu0 %v288
    %v319 = vpop.f32.mrf.mxu0
    %v320 = vadd.f32 0.0, %v319
    %321 = vmatmul.f32.gmra.mxu0 %v291
    %v322 = vpop.f32.mrf.mxu0
    %v323 = vadd.f32 0.0, %v322
    %324 = vmatmul.f32.gmra.mxu0 %v294
    %v325 = vpop.f32.mrf.mxu0
    %v326 = vadd.f32 0.0, %v325
    %327 = vdwg.mxu0
    %v328 = vadd.f32 %v274, %v317
    %v329 = vadd.f32 %v275, %v320
    %v330 = vadd.f32 %v276, %v323
    %v331 = vadd.f32 %v277, %v326
    %v332 = vld [vmem:[%s0 + $0x6] sm:$0xff]
    %v333 = vld [vmem:[%s0 + $0xe] sm:$0xff]
    %v334 = vld [vmem:[%s0 + $0x1e] sm:$0xff]
    %v335 = vld [vmem:[%s0 + $0x26] sm:$0xff]
    %s336 = scalar_lea.vmem %s1, 24
    %v337 = vld [vmem:[%s336] sm:$0xf]
    %v339 = vsel %vm26, %v332, 0
    %v342 = vsel %vm26, %v333, 0
    %v345 = vsel %vm26, %v334, 0
    %v348 = vsel %vm26, %v335, 0
    %v351 = vsel %vm39, %v337, 0
    %353 = vmatpush.msra.mxu0 0.0
    %354 = vmatpush.msra.mxu0 0.0
    %355 = vmatpush.msra.mxu0 0.0
    %356 = vmatpush.msra.mxu0 0.0
    %357 = vmatpush.msra.mxu0 0.0
    %358 = vmatpush.msra.mxu0 0.0
    %359 = vmatpush.msra.mxu0 0.0
    %360 = vmatpush.msra.mxu0 0.0
    %361 = vmatpush.msra.mxu0 0.0
    %362 = vmatpush.msra.mxu0 0.0
    %363 = vmatpush.msra.mxu0 0.0
    %364 = vmatpush.msra.mxu0 0.0
    %365 = vmatpush.msra.mxu0 0.0
    %366 = vmatpush.msra.mxu0 0.0
    %367 = vmatpush.msra.mxu0 0.0
    %368 = vmatpush.msra.mxu0 %v351
    %369 = vmatmul.f32.gmra.mxu0 %v339
    %v370 = vpop.f32.mrf.mxu0
    %v371 = vadd.f32 0.0, %v370
    %372 = vmatmul.f32.gmra.mxu0 %v342
    %v373 = vpop.f32.mrf.mxu0
    %v374 = vadd.f32 0.0, %v373
    %375 = vmatmul.f32.gmra.mxu0 %v345
    %v376 = vpop.f32.mrf.mxu0
    %v377 = vadd.f32 0.0, %v376
    %378 = vmatmul.f32.gmra.mxu0 %v348
    %v379 = vpop.f32.mrf.mxu0
    %v380 = vadd.f32 0.0, %v379
    %381 = vdwg.mxu0
    %v382 = vadd.f32 %v328, %v371
    %v383 = vadd.f32 %v329, %v374
    %v384 = vadd.f32 %v330, %v377
    %v385 = vadd.f32 %v331, %v380
    %v386 = vld [vmem:[%s0 + $0x7] sm:$0xff]
    %v387 = vld [vmem:[%s0 + $0xf] sm:$0xff]
    %v388 = vld [vmem:[%s0 + $0x1f] sm:$0xff]
    %v389 = vld [vmem:[%s0 + $0x27] sm:$0xff]
    %s390 = scalar_lea.vmem %s1, 28
    %v391 = vld [vmem:[%s390] sm:$0xf]
    %v393 = vsel %vm26, %v386, 0
    %v396 = vsel %vm26, %v387, 0
    %v399 = vsel %vm26, %v388, 0
    %v402 = vsel %vm26, %v389, 0
    %v405 = vsel %vm39, %v391, 0
    %407 = vmatpush.msra.mxu0 0.0
    %408 = vmatpush.msra.mxu0 0.0
    %409 = vmatpush.msra.mxu0 0.0
    %410 = vmatpush.msra.mxu0 0.0
    %411 = vmatpush.msra.mxu0 0.0
    %412 = vmatpush.msra.mxu0 0.0
    %413 = vmatpush.msra.mxu0 0.0
    %414 = vmatpush.msra.mxu0 0.0
    %415 = vmatpush.msra.mxu0 0.0
    %416 = vmatpush.msra.mxu0 0.0
    %417 = vmatpush.msra.mxu0 0.0
    %418 = vmatpush.msra.mxu0 0.0
    %419 = vmatpush.msra.mxu0 0.0
    %420 = vmatpush.msra.mxu0 0.0
    %421 = vmatpush.msra.mxu0 0.0
    %422 = vmatpush.msra.mxu0 %v405
    %423 = vmatmul.f32.gmra.mxu0 %v393
    %v424 = vpop.f32.mrf.mxu0
    %v425 = vadd.f32 0.0, %v424
    %426 = vmatmul.f32.gmra.mxu0 %v396
    %v427 = vpop.f32.mrf.mxu0
    %v428 = vadd.f32 0.0, %v427
    %429 = vmatmul.f32.gmra.mxu0 %v399
    %v430 = vpop.f32.mrf.mxu0
    %v431 = vadd.f32 0.0, %v430
    %432 = vmatmul.f32.gmra.mxu0 %v402
    %v433 = vpop.f32.mrf.mxu0
    %v434 = vadd.f32 0.0, %v433
    %435 = vdwg.mxu0
    %v436 = vadd.f32 %v382, %v425
    %v437 = vadd.f32 %v383, %v428
    %v438 = vadd.f32 %v384, %v431
    %v439 = vadd.f32 %v385, %v434
    %v440 = vmax.f32 %v436, 0.0
    %v441 = vmax.f32 %v437, 0.0
    %v442 = vmax.f32 %v438, 0.0
    %v443 = vmax.f32 %v439, 0.0
    %v444 = vld [vmem:[%s2] sm:$0xff]
    %v445 = vld [vmem:[%s2 + $0x8] sm:$0xff]
    %v446 = vmul.f32 %v440, %v444
    %v447 = vmul.f32 %v441, %v445
    %v448 = vmul.f32 %v442, %v444
    %v449 = vmul.f32 %v443, %v445
    %v450 = vmax.f32 %v446, %v447
    %v451 = vrot.slane %v450, 4
    %v452 = vmax.f32 %v450, %v451
    %v453 = vrot.slane %v452, 2
    %v454 = vmax.f32 %v452, %v453
    %v455 = vrot.slane %v454, 1
    %v456 = vmax.f32 %v454, %v455
    %v457 = vmax.f32 %v448, %v449
    %v458 = vrot.slane %v457, 4
    %v459 = vmax.f32 %v457, %v458
    %v460 = vrot.slane %v459, 2
    %v461 = vmax.f32 %v459, %v460
    %v462 = vrot.slane %v461, 1
    %v463 = vmax.f32 %v461, %v462
    %v464 = vmax.f32 %v456, 0.0
    %v465 = vmax.f32 %v463, 0.0
    %vm468 = vcmask 1041409
    %v469 = vsel %vm468, %v465, %v464
    %471 = vst [vmem:[#allocation2] sm:$0x3] %v469
    // Predicated region
    $region14: #{tpu_custom_call.1} parent=1 // pred_check
      _
    $region15: #{tpu_custom_call.1} parent=1 // pred_check_branch
      %473 = sbr.rel (0) target = $region17
    $region16: #{tpu_custom_call.1} parent=1 // pred_region
      %475 = vsyncadd [#allocation3], 0
      %s477 = sshll.u32 [#allocation2], 4
      %s478 = int_to_ptr.vmem [resolvable:$true] %s477
      %s479 = sshll.u32 %s3, 4
      %s480 = int_to_ptr.hbm [resolvable:$true] %s479
      %482 = dma.vmem_to_hbm [thread:$0]  %s478, 32, %s480, [#allocation3]
    $region17: #{tpu_custom_call.1} parent=1 // pred_fallthru
      _
    // Predicated region
    $region18: #{tpu_custom_call.1} parent=1 // pred_check
      _
    $region19: #{tpu_custom_call.1} parent=1 // pred_check_branch
      %484 = sbr.rel (0) target = $region21
    $region20: #{tpu_custom_call.1} parent=1 // pred_region
      %486 = dma.done [#allocation3], 32
    $region21: #{tpu_custom_call.1} parent=1 // pred_fallthru
      _
    %487 = vsyncpa [#allocation3], 1

</llo_original>
